<compile_context>
chip_gen: v7x
topology: tpu7x:2x2x1
jax: 0.10.0
libtpu: 0.0.40
codegen_flags: <defaults>
</compile_context>

<pallas_src>
import functools

import jax
import jax.numpy as jnp
from jax.experimental import pallas as pl
from jax.experimental.pallas import tpu as pltpu

LANE = 128
SUBLANE = 8


def _round_up(x, m):
    return ((x + m - 1) // m) * m


# ---------------------------------------------------------------------------
# Pallas kernel: fused 3-layer MLP (Linear -> ReLU -> Linear -> ReLU -> Linear)
# ---------------------------------------------------------------------------
def _mlp_kernel(x_ref, w0_ref, b0_ref, w1_ref, b1_ref, w2_ref, b2_ref, o_ref):
    # Matmuls hit the MXU with f32 accumulation; bias-add + ReLU on the VPU
    # (free filler under the DMA at these shapes).  The activation cast (a
    # no-op on the default f32 path) happens here in VMEM, not in the
    # wrapper, so it never costs an extra HBM pass.
    x = x_ref[...].astype(w0_ref.dtype)
    h = jnp.dot(x, w0_ref[...], preferred_element_type=jnp.float32)
    h = jnp.maximum(h + b0_ref[...], 0.0).astype(w1_ref.dtype)
    h = jnp.dot(h, w1_ref[...], preferred_element_type=jnp.float32)
    h = jnp.maximum(h + b1_ref[...], 0.0).astype(w2_ref.dtype)
    out = jnp.dot(h, w2_ref[...], preferred_element_type=jnp.float32)
    o_ref[...] = (out + b2_ref[...]).astype(o_ref.dtype)


def prepare_kernel_params(params, *, compute_dtype=jnp.float32):
    """One-time (outside the per-call jit path) parameter prep: cast weights
    to the compute dtype; biases stay f32 for the f32 bias-add.  No padding —
    the kernel emits the true (n, d_out) output directly."""
    w0, b0, w1, b1, w2, b2 = params
    return (w0.astype(compute_dtype), b0.astype(jnp.float32),
            w1.astype(compute_dtype), b1.astype(jnp.float32),
            w2.astype(compute_dtype), b2.astype(jnp.float32))


def mlp_forward_pallas(x2d, kernel_params, *, tm=2048, out_dtype=jnp.float32):
    """x2d: [N, input_dim]. Returns [N, d_out] in out_dtype (default f32)."""
    w0, b0, w1, b1, w2, b2 = kernel_params
    n, d_in = x2d.shape
    d_h0 = w0.shape[1]
    d_h1 = w1.shape[1]
    d_out = w2.shape[1]

    # Row tile: large (default 2048, a multiple of 256 for v6e/v7x and of 128
    # for v5e), but
    #   * clamped to round_up(ceil(n/2), 256) so big inputs always split into
    #     >=2 grid steps (both v7x TensorCores get work via "parallel"),
    #   * clamped to round_up(n, 8) so tiny inputs use a single block of
    #     exactly the right (sublane-aligned) size.
    # No row padding in the wrapper: pl.cdiv + Pallas masking handles the
    # ragged last block (its garbage rows are never stored).
    tm_eff = min(tm, _round_up((n + 1) // 2, 256), _round_up(n, SUBLANE))
    tm_eff = max(tm_eff, SUBLANE)
    grid = (pl.cdiv(n, tm_eff),)

    # Advisory cost hint so XLA schedules this custom call sensibly inside a
    # larger jit.
    flops = 2 * n * (d_in * d_h0 + d_h0 * d_h1 + d_h1 * d_out)
    bytes_accessed = (
        n * d_in * x2d.dtype.itemsize
        + n * d_out * jnp.dtype(out_dtype).itemsize
        + sum(int(a.size) * a.dtype.itemsize for a in kernel_params))
    cost = pl.CostEstimate(flops=flops, transcendentals=0,
                           bytes_accessed=bytes_accessed)

    out = pl.pallas_call(
        _mlp_kernel,
        out_shape=jax.ShapeDtypeStruct((n, d_out), out_dtype),
        grid_spec=pltpu.PrefetchScalarGridSpec(
            num_scalar_prefetch=0,
            grid=grid,
            in_specs=[
                # x: tile over rows, full feature dim.
                pl.BlockSpec((tm_eff, d_in), lambda i: (i, 0)),
                # Weights / biases: full, grid-invariant blocks (constant
                # index_map -> Pallas keeps them resident, no re-DMA).
                pl.BlockSpec((d_in, d_h0), lambda i: (0, 0)),
                pl.BlockSpec((1, d_h0), lambda i: (0, 0)),
                pl.BlockSpec((d_h0, d_h1), lambda i: (0, 0)),
                pl.BlockSpec((1, d_h1), lambda i: (0, 0)),
                pl.BlockSpec((d_h1, d_out), lambda i: (0, 0)),
                pl.BlockSpec((1, d_out), lambda i: (0, 0)),
            ],
            # True-width output block: (tm_eff, d_out); last block dim equals
            # the full array dim, so this is a legal TPU block shape.
            out_specs=pl.BlockSpec((tm_eff, d_out), lambda i: (i, 0)),
        ),
        compiler_params=pltpu.CompilerParams(
            dimension_semantics=("parallel",)),
        cost_estimate=cost,
    )(x2d, w0, b0, w1, b1, w2, b2)
    return out


# ---------------------------------------------------------------------------
# Module-level wrapper mirroring MLP.forward + DistributionWrapper('gaussian')
# ---------------------------------------------------------------------------
def init_mlp_params(key, input_dim, units, layers, out_dim):
    """Init matching torch.nn.Linear defaults: weight and bias both
    uniform(-1/sqrt(fan_in), +1/sqrt(fan_in)).
    dims = [input_dim] + [units]*layers + [out_dim]."""
    dims = [input_dim] + [units] * layers + [out_dim]
    params = []
    for i in range(len(dims) - 1):
        key, wk, bk = jax.random.split(key, 3)
        bound = 1.0 / jnp.sqrt(dims[i])
        w = jax.random.uniform(wk, (dims[i], dims[i + 1]), jnp.float32,
                               minval=-bound, maxval=bound)
        b = jax.random.uniform(bk, (1, dims[i + 1]), jnp.float32,
                               minval=-bound, maxval=bound)
        params += [w, b]
    return tuple(params)


@functools.partial(jax.jit, static_argnames=("tm", "out_dtype"))
def mlp_forward(x, kernel_params, *, tm=2048, out_dtype=jnp.float32):
    """Mimics MLP.forward: flattens leading dims, runs the fused kernel,
    reshapes back.  `kernel_params` should come from prepare_kernel_params()
    (called once at parameter load, not per step).  Returns the network
    output ("logits"); for dist='gaussian', DistributionWrapper.mode() is
    exactly this tensor."""
    orig_shape = x.shape
    x2d = x.reshape(-1, x.shape[-1]) if x.ndim > 2 else x
    out = mlp_forward_pallas(x2d, kernel_params, tm=tm, out_dtype=out_dtype)
    if x.ndim > 2:
        out = out.reshape(orig_shape[:-1] + (out.shape[-1],))
    return out


def gaussian_mode(logits):
    # DistributionWrapper(dist_type='gaussian').mode() == logits
    return logits


def gaussian_sample(key, logits, std=0.1):
    # td.Normal(logits, 0.1).sample()
    return logits + std * jax.random.normal(key, logits.shape, logits.dtype)

# TODO(synk): other dist_types ('symlog_disc', 'binary', 'onehot') of
# DistributionWrapper are not part of the MLP hot path and are left out.


# ---------------------------------------------------------------------------
# Pure-JAX reference for correctness checking
# ---------------------------------------------------------------------------
def mlp_reference(x, params):
    w0, b0, w1, b1, w2, b2 = params
    x2d = x.reshape(-1, x.shape[-1])
    h = jnp.maximum(x2d @ w0 + b0, 0.0)
    h = jnp.maximum(h @ w1 + b1, 0.0)
    out = h @ w2 + b2
    return out.reshape(x.shape[:-1] + (out.shape[-1],))


if __name__ == "__main__":
    key = jax.random.PRNGKey(0)
    key, xk, pk, xk2 = jax.random.split(key, 4)

    # Shapes consistent with the module:
    #   input_dim=16, layers=2, units=32, output_shape=(8,)
    B, T, D_IN = 2, 8, 16
    UNITS, LAYERS, D_OUT = 32, 2, 8

    params = init_mlp_params(pk, D_IN, UNITS, LAYERS, D_OUT)

    # Parameter prep done ONCE, outside the per-call path (f32 default:
    # right choice on v5e; bf16 only pays when x arrives in bf16 upstream).
    kparams_f32 = prepare_kernel_params(params, compute_dtype=jnp.float32)
    kparams_bf16 = prepare_kernel_params(params, compute_dtype=jnp.bfloat16)

    # --- small case, f32 compute: exact vs. reference -----------------------
    x = jax.random.normal(xk, (B, T, D_IN), jnp.float32)
    out = jax.block_until_ready(mlp_forward(x, kparams_f32))
    ref = mlp_reference(x, params)
    assert out.shape == (B, T, D_OUT), out.shape
    assert jnp.allclose(out, ref, atol=1e-5, rtol=1e-5), (
        float(jnp.max(jnp.abs(out - ref))))

    # --- larger case: multi-step grid + ragged last row block, f32 ----------
    B2, T2 = 4, 300  # 1200 rows -> tm_eff=768 -> 2 grid steps, last ragged
    x2 = jax.random.normal(xk2, (B2, T2, D_IN), jnp.float32)
    out2 = jax.block_until_ready(mlp_forward(x2, kparams_f32))
    ref2 = mlp_reference(x2, params)
    assert out2.shape == (B2, T2, D_OUT), out2.shape
    assert jnp.allclose(out2, ref2, atol=1e-5, rtol=1e-5), (
        float(jnp.max(jnp.abs(out2 - ref2))))

    # --- same case, bf16 compute path (in-kernel cast; v6e/v7x option) ------
    out2_bf16 = jax.block_until_ready(mlp_forward(x2, kparams_bf16))
    assert out2_bf16.shape == (B2, T2, D_OUT), out2_bf16.shape
    assert jnp.allclose(out2_bf16, ref2, atol=1e-1, rtol=1e-1), (
        float(jnp.max(jnp.abs(out2_bf16 - ref2))))

    # mode() of the gaussian DistributionWrapper is the output itself.
    mode = gaussian_mode(out)
    assert mode.shape == (B, T, D_OUT)

    print("KERNEL_OK")
</pallas_src>

<mosaic_0001>
module attributes {stable_mosaic.version = 11 : i64} {
  func.func @_mlp_kernel(%arg0: i32, %arg1: memref<16x16xf32, #tpu.memory_space<vmem>>, %arg2: memref<16x32xf32, #tpu.memory_space<vmem>>, %arg3: memref<1x32xf32, #tpu.memory_space<vmem>>, %arg4: memref<32x32xf32, #tpu.memory_space<vmem>>, %arg5: memref<1x32xf32, #tpu.memory_space<vmem>>, %arg6: memref<32x8xf32, #tpu.memory_space<vmem>>, %arg7: memref<1x8xf32, #tpu.memory_space<vmem>>, %arg8: memref<16x8xf32, #tpu.memory_space<vmem>>) attributes {dimension_semantics = [#tpu.dimension_semantics<parallel>], iteration_bounds = array<i64: 1>, scalar_prefetch = 0 : i64, scratch_operands = 0 : i64, tpu.core_type = #tpu.core_type<tc>, window_params = [{transform_indices = @transform_0, window_bounds = array<i64: 16, 16>}, {pipeline_mode = #tpu.pipeline_mode<synchronous>, transform_indices = @transform_1, window_bounds = array<i64: 16, 32>}, {pipeline_mode = #tpu.pipeline_mode<synchronous>, transform_indices = @transform_2, window_bounds = array<i64: 1, 32>}, {pipeline_mode = #tpu.pipeline_mode<synchronous>, transform_indices = @transform_3, window_bounds = array<i64: 32, 32>}, {pipeline_mode = #tpu.pipeline_mode<synchronous>, transform_indices = @transform_4, window_bounds = array<i64: 1, 32>}, {pipeline_mode = #tpu.pipeline_mode<synchronous>, transform_indices = @transform_5, window_bounds = array<i64: 32, 8>}, {pipeline_mode = #tpu.pipeline_mode<synchronous>, transform_indices = @transform_6, window_bounds = array<i64: 1, 8>}, {transform_indices = @transform_7, window_bounds = array<i64: 16, 8>}]} {
    %c0 = arith.constant 0 : index
    %c0_0 = arith.constant 0 : index
    %0 = vector.load %arg1[%c0, %c0_0] : memref<16x16xf32, #tpu.memory_space<vmem>>, vector<16x16xf32>
    %c0_1 = arith.constant 0 : index
    %c0_2 = arith.constant 0 : index
    %1 = vector.load %arg2[%c0_1, %c0_2] : memref<16x32xf32, #tpu.memory_space<vmem>>, vector<16x32xf32>
    %cst = arith.constant dense<0.000000e+00> : vector<16x32xf32>
    %2 = tpu.matmul %0, %1, %cst {dimension_numbers = #tpu.dot_dimension_numbers<[1], [0], [0], [1], [0, 0, 1, 1], [], []>} : vector<16x16xf32>, vector<16x32xf32>, vector<16x32xf32> -> vector<16x32xf32>
    %c0_3 = arith.constant 0 : index
    %c0_4 = arith.constant 0 : index
    %3 = vector.load %arg3[%c0_3, %c0_4] : memref<1x32xf32, #tpu.memory_space<vmem>>, vector<1x32xf32>
    %4 = vector.broadcast %3 : vector<1x32xf32> to vector<16x32xf32>
    %5 = arith.addf %2, %4 : vector<16x32xf32>
    %cst_5 = arith.constant 0.000000e+00 : f32
    %6 = vector.broadcast %cst_5 : f32 to vector<16x32xf32>
    %7 = arith.maximumf %5, %6 : vector<16x32xf32>
    %c0_6 = arith.constant 0 : index
    %c0_7 = arith.constant 0 : index
    %8 = vector.load %arg4[%c0_6, %c0_7] : memref<32x32xf32, #tpu.memory_space<vmem>>, vector<32x32xf32>
    %cst_8 = arith.constant dense<0.000000e+00> : vector<16x32xf32>
    %9 = tpu.matmul %7, %8, %cst_8 {dimension_numbers = #tpu.dot_dimension_numbers<[1], [0], [0], [1], [0, 0, 1, 1], [], []>} : vector<16x32xf32>, vector<32x32xf32>, vector<16x32xf32> -> vector<16x32xf32>
    %c0_9 = arith.constant 0 : index
    %c0_10 = arith.constant 0 : index
    %10 = vector.load %arg5[%c0_9, %c0_10] : memref<1x32xf32, #tpu.memory_space<vmem>>, vector<1x32xf32>
    %11 = vector.broadcast %10 : vector<1x32xf32> to vector<16x32xf32>
    %12 = arith.addf %9, %11 : vector<16x32xf32>
    %cst_11 = arith.constant 0.000000e+00 : f32
    %13 = vector.broadcast %cst_11 : f32 to vector<16x32xf32>
    %14 = arith.maximumf %12, %13 : vector<16x32xf32>
    %c0_12 = arith.constant 0 : index
    %c0_13 = arith.constant 0 : index
    %15 = vector.load %arg6[%c0_12, %c0_13] : memref<32x8xf32, #tpu.memory_space<vmem>>, vector<32x8xf32>
    %cst_14 = arith.constant dense<0.000000e+00> : vector<16x8xf32>
    %16 = tpu.matmul %14, %15, %cst_14 {dimension_numbers = #tpu.dot_dimension_numbers<[1], [0], [0], [1], [0, 0, 1, 1], [], []>} : vector<16x32xf32>, vector<32x8xf32>, vector<16x8xf32> -> vector<16x8xf32>
    %c0_15 = arith.constant 0 : index
    %c0_16 = arith.constant 0 : index
    %17 = vector.load %arg7[%c0_15, %c0_16] : memref<1x8xf32, #tpu.memory_space<vmem>>, vector<1x8xf32>
    %18 = vector.broadcast %17 : vector<1x8xf32> to vector<16x8xf32>
    %19 = arith.addf %16, %18 : vector<16x8xf32>
    %c0_17 = arith.constant 0 : index
    %c0_18 = arith.constant 0 : index
    %20 = vector.load %arg8[%c0_17, %c0_18] : memref<16x8xf32, #tpu.memory_space<vmem>>, vector<16x8xf32>
    tpu.vector_store %arg8[%c0_17, %c0_18], %19 {strides = array<i32>} : memref<16x8xf32, #tpu.memory_space<vmem>>, vector<16x8xf32>,
    return
  }
  func.func @transform_0(%arg0: i32) -> (i32, i32) {
    %c0_i32 = arith.constant 0 : i32
    %c0_i32_0 = arith.constant 0 : i32
    return %arg0, %c0_i32 : i32, i32
  }
  func.func @transform_1(%arg0: i32) -> (i32, i32) {
    %c0_i32 = arith.constant 0 : i32
    %c0_i32_0 = arith.constant 0 : i32
    %c0_i32_1 = arith.constant 0 : i32
    return %c0_i32, %c0_i32_0 : i32, i32
  }
  func.func @transform_2(%arg0: i32) -> (i32, i32) {
    %c0_i32 = arith.constant 0 : i32
    %c0_i32_0 = arith.constant 0 : i32
    %c0_i32_1 = arith.constant 0 : i32
    return %c0_i32, %c0_i32_0 : i32, i32
  }
  func.func @transform_3(%arg0: i32) -> (i32, i32) {
    %c0_i32 = arith.constant 0 : i32
    %c0_i32_0 = arith.constant 0 : i32
    %c0_i32_1 = arith.constant 0 : i32
    return %c0_i32, %c0_i32_0 : i32, i32
  }
  func.func @transform_4(%arg0: i32) -> (i32, i32) {
    %c0_i32 = arith.constant 0 : i32
    %c0_i32_0 = arith.constant 0 : i32
    %c0_i32_1 = arith.constant 0 : i32
    return %c0_i32, %c0_i32_0 : i32, i32
  }
  func.func @transform_5(%arg0: i32) -> (i32, i32) {
    %c0_i32 = arith.constant 0 : i32
    %c0_i32_0 = arith.constant 0 : i32
    %c0_i32_1 = arith.constant 0 : i32
    return %c0_i32, %c0_i32_0 : i32, i32
  }
  func.func @transform_6(%arg0: i32) -> (i32, i32) {
    %c0_i32 = arith.constant 0 : i32
    %c0_i32_0 = arith.constant 0 : i32
    %c0_i32_1 = arith.constant 0 : i32
    return %c0_i32, %c0_i32_0 : i32, i32
  }
  func.func @transform_7(%arg0: i32) -> (i32, i32) {
    %c0_i32 = arith.constant 0 : i32
    %c0_i32_0 = arith.constant 0 : i32
    return %arg0, %c0_i32 : i32, i32
  }
}

</mosaic_0001>

<llo_original>
// kernel: mlp_forward.1
$region0: #{mlp_forward.1}
  #allocation0 [shape = 'u32[]', space=smem, size = 0x4, offset = 0x4, fixed_abs, tag = 'smem constant byte address 0x4 - core index']
  #allocation1 [shape = 'u32[144,128]{1,0:T(1,128)}', space=vmem, size = 0x12000, scoped, tag = 'internal scratch']
  %s0 = inlined_call_operand.vmem [shape: f32[16,16], index: 0, kind: input, shape index: {}]
  %s1 = inlined_call_operand.hbm [shape: f32[16,32], index: 1, kind: input, shape index: {}]
  %s2 = inlined_call_operand.vmem [shape: f32[1,32], index: 2, kind: input, shape index: {}]
  %s3 = inlined_call_operand.vmem [shape: f32[32,32], index: 3, kind: input, shape index: {}]
  %s4 = inlined_call_operand.vmem [shape: f32[1,32], index: 4, kind: input, shape index: {}]
  %s5 = inlined_call_operand.vmem [shape: f32[32,8], index: 5, kind: input, shape index: {}]
  %s6 = inlined_call_operand.vmem [shape: f32[1,8], index: 6, kind: input, shape index: {}]
  %s7 = inlined_call_operand.hbm [shape: f32[16,8], index: 7, kind: output, shape index: {}]
  %s8 = sld [smem:[#allocation0]]
  $region42: #{mlp_forward.1} parent=0
    _
  %s10 = ssub.s32 1, %s8
  %s11 = scalar_select 0, %s10, %s8
  $region1: #{mlp_forward.1} parent=0
    #allocation2 [shape = 'u8[8192]{0}', space=vmem, size = 0x2000, scoped, tag = 'input window, operand 1, single buffered']
    #allocation3 [shape = 's32[1]{0}', space=sflag, size = 0x4, scoped, tag = 'scoped memory for mlp_forward.1']
    #allocation4 [shape = 's32[1]{0}', space=sflag, size = 0x4, scoped, tag = 'scoped memory for mlp_forward.1']
    #allocation5 [shape = 'u8[8192]{0}', space=vmem, size = 0x2000, scoped, tag = 'output window, operand 0, single buffered']
    %12 = vsyncpa [#allocation3], 0
    %13 = vsyncpa [#allocation4], 0
    // Predicated region
    $region2: #{mlp_forward.1} parent=1 // pred_check
      _
    $region3: #{mlp_forward.1} parent=1 // pred_check_branch
      %15 = sbr.rel (0) target = $region5
    $region4: #{mlp_forward.1} parent=1 // pred_region
      _
    $region5: #{mlp_forward.1} parent=1 // pred_fallthru
      _
    // Predicated region
    $region6: #{mlp_forward.1} parent=1 // pred_check
      _
    $region7: #{mlp_forward.1} parent=1 // pred_check_branch
      %17 = sbr.rel (0) target = $region9
    $region8: #{mlp_forward.1} parent=1 // pred_region
      %s19 = ssub.s32 256, 256
      %20 = vsyncadd [#allocation3], %s19
      %s21 = sshll.u32 [#allocation2], 4
      %s22 = int_to_ptr.vmem [resolvable:$true] %s21
      %27 = dma.hbm_to_vmem [thread:$0]  %s1, 256, %s22, [#allocation3], 128, 128, 8
    $region9: #{mlp_forward.1} parent=1 // pred_fallthru
      _
    // Predicated region
    $region10: #{mlp_forward.1} parent=1 // pred_check
      _
    $region11: #{mlp_forward.1} parent=1 // pred_check_branch
      %29 = sbr.rel (0) target = $region13
    $region12: #{mlp_forward.1} parent=1 // pred_region
      _
    $region13: #{mlp_forward.1} parent=1 // pred_fallthru
      _
    // Predicated region
    $region14: #{mlp_forward.1} parent=1 // pred_check
      _
    $region15: #{mlp_forward.1} parent=1 // pred_check_branch
      %31 = sbr.rel (0) target = $region17
    $region16: #{mlp_forward.1} parent=1 // pred_region
      _
    $region17: #{mlp_forward.1} parent=1 // pred_fallthru
      _
    // Predicated region
    $region18: #{mlp_forward.1} parent=1 // pred_check
      _
    $region19: #{mlp_forward.1} parent=1 // pred_check_branch
      %33 = sbr.rel (0) target = $region21
    $region20: #{mlp_forward.1} parent=1 // pred_region
      _
    $region21: #{mlp_forward.1} parent=1 // pred_fallthru
      _
    // Predicated region
    $region22: #{mlp_forward.1} parent=1 // pred_check
      _
    $region23: #{mlp_forward.1} parent=1 // pred_check_branch
      %35 = sbr.rel (0) target = $region25
    $region24: #{mlp_forward.1} parent=1 // pred_region
      _
    $region25: #{mlp_forward.1} parent=1 // pred_fallthru
      _
    // Predicated region
    $region26: #{mlp_forward.1} parent=1 // pred_check
      _
    $region27: #{mlp_forward.1} parent=1 // pred_check_branch
      %37 = sbr.rel (0) target = $region29
    $region28: #{mlp_forward.1} parent=1 // pred_region
      _
    $region29: #{mlp_forward.1} parent=1 // pred_fallthru
      _
    // Predicated region
    $region30: #{mlp_forward.1} parent=1 // pred_check
      _
    $region31: #{mlp_forward.1} parent=1 // pred_check_branch
      %39 = sbr.rel (0) target = $region33
    $region32: #{mlp_forward.1} parent=1 // pred_region
      %40 = dma.done [#allocation3], 256
    $region33: #{mlp_forward.1} parent=1 // pred_fallthru
      _
    %v41 = vld [vmem:[%s0] sm:$0xff]
    %v42 = vld [vmem:[%s0 + $0x8] sm:$0xff]
    %v43 = vld [vmem:[#allocation2] sm:$0xff]
    %v44 = vld [vmem:[#allocation2 + $0x8] sm:$0xff]
    %v45 = vld [vmem:[%s2] sm:$0x1]
    %v47 = vlaneseq
    %v48 = vshrl.u32 %v47, 7
    %v49 = vsub.s32 0, %v48
    %v50 = vrot.slane %v45, %v49
    %vm52 = vcmask 130048
    %v54 = vsel %vm52, %v41, 0
    %v57 = vsel %vm52, %v42, 0
    %59 = vmatprep.subr.mxu0 0.0
    %60 = vmatpush1.msra.mxu0 %v43
    %61 = vmatprep.subr.mxu0 0.0
    %62 = vmatpush1.msra.mxu0 %v44
    %63 = vmatprep.subr.mxu0 0.0
    %64 = vmatpush1.msra.mxu0 0.0
    %65 = vmatprep.subr.mxu0 0.0
    %66 = vmatpush1.msra.mxu0 0.0
    %67 = vmatprep.subr.mxu0 0.0
    %68 = vmatpush1.msra.mxu0 0.0
    %69 = vmatprep.subr.mxu0 0.0
    %70 = vmatpush1.msra.mxu0 0.0
    %71 = vmatprep.subr.mxu0 0.0
    %72 = vmatpush1.msra.mxu0 0.0
    %73 = vmatprep.subr.mxu0 0.0
    %74 = vmatpush1.msra.mxu0 0.0
    %75 = vmatprep.subr.mxu0 0.0
    %76 = vmatpush1.msra.mxu0 0.0
    %77 = vmatprep.subr.mxu0 0.0
    %78 = vmatpush1.msra.mxu0 0.0
    %79 = vmatprep.subr.mxu0 0.0
    %80 = vmatpush1.msra.mxu0 0.0
    %81 = vmatprep.subr.mxu0 0.0
    %82 = vmatpush1.msra.mxu0 0.0
    %83 = vmatprep.subr.mxu0 0.0
    %84 = vmatpush1.msra.mxu0 0.0
    %85 = vmatprep.subr.mxu0 0.0
    %86 = vmatpush1.msra.mxu0 0.0
    %87 = vmatprep.subr.mxu0 0.0
    %88 = vmatpush1.msra.mxu0 0.0
    %89 = vmatprep.subr.mxu0 0.0
    %90 = vmatpush1.msra.mxu0 0.0
    %91 = vmatprep.subr.mxu0 0.0
    %92 = vmatpush1.msra.mxu0 0.0
    %93 = vmatprep.subr.mxu0 0.0
    %94 = vmatpush1.msra.mxu0 0.0
    %95 = vmatprep.subr.mxu0 0.0
    %96 = vmatpush1.msra.mxu0 0.0
    %97 = vmatprep.subr.mxu0 0.0
    %98 = vmatpush1.msra.mxu0 0.0
    %99 = vmatprep.subr.mxu0 0.0
    %100 = vmatpush1.msra.mxu0 0.0
    %101 = vmatprep.subr.mxu0 0.0
    %102 = vmatpush1.msra.mxu0 0.0
    %103 = vmatprep.subr.mxu0 0.0
    %104 = vmatpush1.msra.mxu0 0.0
    %105 = vmatprep.subr.mxu0 0.0
    %106 = vmatpush1.msra.mxu0 0.0
    %107 = vmatprep.subr.mxu0 0.0
    %108 = vmatpush1.msra.mxu0 0.0
    %109 = vmatprep.subr.mxu0 0.0
    %110 = vmatpush1.msra.mxu0 0.0
    %111 = vmatprep.subr.mxu0 0.0
    %112 = vmatpush1.msra.mxu0 0.0
    %113 = vmatprep.subr.mxu0 0.0
    %114 = vmatpush1.msra.mxu0 0.0
    %115 = vmatprep.subr.mxu0 0.0
    %116 = vmatpush1.msra.mxu0 0.0
    %117 = vmatprep.subr.mxu0 0.0
    %118 = vmatpush1.msra.mxu0 0.0
    %119 = vmatprep.subr.mxu0 0.0
    %120 = vmatpush1.msra.mxu0 0.0
    %121 = vmatprep.subr.mxu0 0.0
    %122 = vmatpush1.msra.mxu0 0.0
    %123 = vmatprep.mubr.f32.mxu0 0.0
    %124 = vmatmul.mubr.f32.gmra.mrb[0].mxu0 %v54
    %v125 = vpop.f32.mrb[0].mxu0
    %v126 = vadd.f32 %v50, %v125
    %v127 = vpop.f32.mrb[0].mxu0
    %128 = vmatprep.mubr.f32.mxu0 0.0
    %129 = vmatmul.mubr.f32.gmra.mrb[0].mxu0 %v57
    %v130 = vpop.f32.mrb[0].mxu0
    %v131 = vadd.f32 %v50, %v130
    %v132 = vpop.f32.mrb[0].mxu0
    %133 = vdwg.mxu0
    %v134 = vmax.f32 %v126, 0.0
    %v135 = vmax.f32 %v131, 0.0
    %v136 = vld [vmem:[%s3] sm:$0xff]
    %v137 = vld [vmem:[%s3 + $0x8] sm:$0xff]
    %v138 = vld [vmem:[%s3 + $0x10] sm:$0xff]
    %v139 = vld [vmem:[%s3 + $0x18] sm:$0xff]
    %v140 = vld [vmem:[%s4] sm:$0x1]
    %v142 = vlaneseq
    %v143 = vshrl.u32 %v142, 7
    %v144 = vsub.s32 0, %v143
    %v145 = vrot.slane %v140, %v144
    %vm147 = vcmask 261120
    %v149 = vsel %vm147, %v134, 0
    %v152 = vsel %vm147, %v135, 0
    %154 = vmatprep.subr.mxu0 0.0
    %155 = vmatpush1.msra.mxu0 %v136
    %156 = vmatprep.subr.mxu0 0.0
    %157 = vmatpush1.msra.mxu0 %v137
    %158 = vmatprep.subr.mxu0 0.0
    %159 = vmatpush1.msra.mxu0 %v138
    %160 = vmatprep.subr.mxu0 0.0
    %161 = vmatpush1.msra.mxu0 %v139
    %162 = vmatprep.subr.mxu0 0.0
    %163 = vmatpush1.msra.mxu0 0.0
    %164 = vmatprep.subr.mxu0 0.0
    %165 = vmatpush1.msra.mxu0 0.0
    %166 = vmatprep.subr.mxu0 0.0
    %167 = vmatpush1.msra.mxu0 0.0
    %168 = vmatprep.subr.mxu0 0.0
    %169 = vmatpush1.msra.mxu0 0.0
    %170 = vmatprep.subr.mxu0 0.0
    %171 = vmatpush1.msra.mxu0 0.0
    %172 = vmatprep.subr.mxu0 0.0
    %173 = vmatpush1.msra.mxu0 0.0
    %174 = vmatprep.subr.mxu0 0.0
    %175 = vmatpush1.msra.mxu0 0.0
    %176 = vmatprep.subr.mxu0 0.0
    %177 = vmatpush1.msra.mxu0 0.0
    %178 = vmatprep.subr.mxu0 0.0
    %179 = vmatpush1.msra.mxu0 0.0
    %180 = vmatprep.subr.mxu0 0.0
    %181 = vmatpush1.msra.mxu0 0.0
    %182 = vmatprep.subr.mxu0 0.0
    %183 = vmatpush1.msra.mxu0 0.0
    %184 = vmatprep.subr.mxu0 0.0
    %185 = vmatpush1.msra.mxu0 0.0
    %186 = vmatprep.subr.mxu0 0.0
    %187 = vmatpush1.msra.mxu0 0.0
    %188 = vmatprep.subr.mxu0 0.0
    %189 = vmatpush1.msra.mxu0 0.0
    %190 = vmatprep.subr.mxu0 0.0
    %191 = vmatpush1.msra.mxu0 0.0
    %192 = vmatprep.subr.mxu0 0.0
    %193 = vmatpush1.msra.mxu0 0.0
    %194 = vmatprep.subr.mxu0 0.0
    %195 = vmatpush1.msra.mxu0 0.0
    %196 = vmatprep.subr.mxu0 0.0
    %197 = vmatpush1.msra.mxu0 0.0
    %198 = vmatprep.subr.mxu0 0.0
    %199 = vmatpush1.msra.mxu0 0.0
    %200 = vmatprep.subr.mxu0 0.0
    %201 = vmatpush1.msra.mxu0 0.0
    %202 = vmatprep.subr.mxu0 0.0
    %203 = vmatpush1.msra.mxu0 0.0
    %204 = vmatprep.subr.mxu0 0.0
    %205 = vmatpush1.msra.mxu0 0.0
    %206 = vmatprep.subr.mxu0 0.0
    %207 = vmatpush1.msra.mxu0 0.0
    %208 = vmatprep.subr.mxu0 0.0
    %209 = vmatpush1.msra.mxu0 0.0
    %210 = vmatprep.subr.mxu0 0.0
    %211 = vmatpush1.msra.mxu0 0.0
    %212 = vmatprep.subr.mxu0 0.0
    %213 = vmatpush1.msra.mxu0 0.0
    %214 = vmatprep.subr.mxu0 0.0
    %215 = vmatpush1.msra.mxu0 0.0
    %216 = vmatprep.subr.mxu0 0.0
    %217 = vmatpush1.msra.mxu0 0.0
    %218 = vmatprep.mubr.f32.mxu0 0.0
    %219 = vmatmul.mubr.f32.gmra.mrb[0].mxu0 %v149
    %v220 = vpop.f32.mrb[0].mxu0
    %v221 = vadd.f32 %v145, %v220
    %v222 = vpop.f32.mrb[0].mxu0
    %223 = vmatprep.mubr.f32.mxu0 0.0
    %224 = vmatmul.mubr.f32.gmra.mrb[0].mxu0 %v152
    %v225 = vpop.f32.mrb[0].mxu0
    %v226 = vadd.f32 %v145, %v225
    %v227 = vpop.f32.mrb[0].mxu0
    %228 = vdwg.mxu0
    %v229 = vmax.f32 %v221, 0.0
    %v230 = vmax.f32 %v226, 0.0
    %v231 = vld [vmem:[%s5] sm:$0xff]
    %v232 = vld [vmem:[%s5 + $0x8] sm:$0xff]
    %v233 = vld [vmem:[%s5 + $0x10] sm:$0xff]
    %v234 = vld [vmem:[%s5 + $0x18] sm:$0xff]
    %v235 = vld [vmem:[%s6] sm:$0x1]
    %v237 = vlaneseq
    %v238 = vshrl.u32 %v237, 7
    %v239 = vsub.s32 0, %v238
    %v240 = vrot.slane %v235, %v239
    %v243 = vsel %vm147, %v229, 0
    %v246 = vsel %vm147, %v230, 0
    %248 = vmatprep.subr.mxu0 0.0
    %249 = vmatpush1.msra.mxu0 %v231
    %250 = vmatprep.subr.mxu0 0.0
    %251 = vmatpush1.msra.mxu0 %v232
    %252 = vmatprep.subr.mxu0 0.0
    %253 = vmatpush1.msra.mxu0 %v233
    %254 = vmatprep.subr.mxu0 0.0
    %255 = vmatpush1.msra.mxu0 %v234
    %256 = vmatprep.subr.mxu0 0.0
    %257 = vmatpush1.msra.mxu0 0.0
    %258 = vmatprep.subr.mxu0 0.0
    %259 = vmatpush1.msra.mxu0 0.0
    %260 = vmatprep.subr.mxu0 0.0
    %261 = vmatpush1.msra.mxu0 0.0
    %262 = vmatprep.subr.mxu0 0.0
    %263 = vmatpush1.msra.mxu0 0.0
    %264 = vmatprep.subr.mxu0 0.0
    %265 = vmatpush1.msra.mxu0 0.0
    %266 = vmatprep.subr.mxu0 0.0
    %267 = vmatpush1.msra.mxu0 0.0
    %268 = vmatprep.subr.mxu0 0.0
    %269 = vmatpush1.msra.mxu0 0.0
    %270 = vmatprep.subr.mxu0 0.0
    %271 = vmatpush1.msra.mxu0 0.0
    %272 = vmatprep.subr.mxu0 0.0
    %273 = vmatpush1.msra.mxu0 0.0
    %274 = vmatprep.subr.mxu0 0.0
    %275 = vmatpush1.msra.mxu0 0.0
    %276 = vmatprep.subr.mxu0 0.0
    %277 = vmatpush1.msra.mxu0 0.0
    %278 = vmatprep.subr.mxu0 0.0
    %279 = vmatpush1.msra.mxu0 0.0
    %280 = vmatprep.subr.mxu0 0.0
    %281 = vmatpush1.msra.mxu0 0.0
    %282 = vmatprep.subr.mxu0 0.0
    %283 = vmatpush1.msra.mxu0 0.0
    %284 = vmatprep.subr.mxu0 0.0
    %285 = vmatpush1.msra.mxu0 0.0
    %286 = vmatprep.subr.mxu0 0.0
    %287 = vmatpush1.msra.mxu0 0.0
    %288 = vmatprep.subr.mxu0 0.0
    %289 = vmatpush1.msra.mxu0 0.0
    %290 = vmatprep.subr.mxu0 0.0
    %291 = vmatpush1.msra.mxu0 0.0
    %292 = vmatprep.subr.mxu0 0.0
    %293 = vmatpush1.msra.mxu0 0.0
    %294 = vmatprep.subr.mxu0 0.0
    %295 = vmatpush1.msra.mxu0 0.0
    %296 = vmatprep.subr.mxu0 0.0
    %297 = vmatpush1.msra.mxu0 0.0
    %298 = vmatprep.subr.mxu0 0.0
    %299 = vmatpush1.msra.mxu0 0.0
    %300 = vmatprep.subr.mxu0 0.0
    %301 = vmatpush1.msra.mxu0 0.0
    %302 = vmatprep.subr.mxu0 0.0
    %303 = vmatpush1.msra.mxu0 0.0
    %304 = vmatprep.subr.mxu0 0.0
    %305 = vmatpush1.msra.mxu0 0.0
    %306 = vmatprep.subr.mxu0 0.0
    %307 = vmatpush1.msra.mxu0 0.0
    %308 = vmatprep.subr.mxu0 0.0
    %309 = vmatpush1.msra.mxu0 0.0
    %310 = vmatprep.subr.mxu0 0.0
    %311 = vmatpush1.msra.mxu0 0.0
    %312 = vmatprep.mubr.f32.mxu0 0.0
    %313 = vmatmul.mubr.f32.gmra.mrb[0].mxu0 %v243
    %v314 = vpop.f32.mrb[0].mxu0
    %v315 = vadd.f32 %v240, %v314
    %v316 = vpop.f32.mrb[0].mxu0
    %317 = vmatprep.mubr.f32.mxu0 0.0
    %318 = vmatmul.mubr.f32.gmra.mrb[0].mxu0 %v246
    %v319 = vpop.f32.mrb[0].mxu0
    %v320 = vadd.f32 %v240, %v319
    %v321 = vpop.f32.mrb[0].mxu0
    %322 = vdwg.mxu0
    %vm323 = vcmask 64512
    %324 = vst.msk [vmem:[#allocation5] sm:$0xff] %vm323, %v315
    %325 = vst.msk [vmem:[#allocation5 + $0x8] sm:$0xff] %vm323, %v320
    // Predicated region
    $region34: #{mlp_forward.1} parent=1 // pred_check
      _
    $region35: #{mlp_forward.1} parent=1 // pred_check_branch
      %327 = sbr.rel (0) target = $region37
    $region36: #{mlp_forward.1} parent=1 // pred_region
      %s329 = ssub.s32 256, 256
      %330 = vsyncadd [#allocation4], %s329
      %s331 = sshll.u32 [#allocation5], 4
      %s332 = int_to_ptr.vmem [resolvable:$true] %s331
      %337 = dma.vmem_to_hbm [thread:$0]  %s332, 256, %s7, [#allocation4], 128, 128, 8
    $region37: #{mlp_forward.1} parent=1 // pred_fallthru
      _
    // Predicated region
    $region38: #{mlp_forward.1} parent=1 // pred_check
      _
    $region39: #{mlp_forward.1} parent=1 // pred_check_branch
      %339 = sbr.rel (0) target = $region41
    $region40: #{mlp_forward.1} parent=1 // pred_region
      %340 = dma.done [#allocation4], 256
    $region41: #{mlp_forward.1} parent=1 // pred_fallthru
      _
    %341 = vsyncpa [#allocation3], 1
    %342 = vsyncpa [#allocation4], 1

</llo_original>
